<compile_context>
chip_gen: v7x
topology: tpu7x:2x2x1
jax: 0.10.0
libtpu: 0.0.40
codegen_flags: <defaults>
</compile_context>

<pallas_src>
import math

import jax
import jax.numpy as jnp
from jax.experimental import pallas as pl
from jax.experimental.pallas import tpu as pltpu

_LOG_2PI = math.log(2.0 * math.pi)


def _gaussian_leaf_kernel(x_ref, a_ref, b_ref, c_ref, o_ref):
    """Gaussian leaf log-densities in quadratic form.

    x_ref : (TB, D, TV)  batch tile of inputs           (num_var on lanes)
    a_ref : (K,  D, TV)  precomputed -0.5 * exp(-2*ls)
    b_ref : (K,  D, TV)  precomputed  mu  * exp(-2*ls)
    c_ref : (K,  TV)     precomputed constant term (already summed over D)
    o_ref : (TB, K, TV)  out[t,k,v] = sum_d a[k,d,v]*x[t,d,v]^2
                                      + b[k,d,v]*x[t,d,v]  + c[k,v]
    """
    D = x_ref.shape[1]
    acc = None
    for d in range(D):  # static unroll over num_dims (small: 1..8)
        x_d = x_ref[:, d, :][:, None, :]          # (TB, 1, TV)
        a_d = a_ref[:, d, :][None, :, :]          # (1,  K, TV)
        b_d = b_ref[:, d, :][None, :, :]          # (1,  K, TV)
        term = (a_d * x_d + b_d) * x_d            # (TB, K, TV)  pure VPU work
        acc = term if acc is None else acc + term
    o_ref[...] = acc + c_ref[...][None, :, :]


def _round_up(n, m):
    return ((n + m - 1) // m) * m


def _pick_v_tile(vp):
    # vp is a multiple of 128; pick the largest tile <= 512 that divides it.
    for tv in (512, 384, 256, 128):
        if vp % tv == 0:
            return tv
    return vp


def layer_forward_ndv(x_bdv, mu_kdv, logsigma_kdv):
    """EiNet Gaussian-leaf Layer.forward on (B, D, V)-laid-out inputs.

    x_bdv        : (batch_size, num_dims, num_var)
    mu_kdv       : (num_dist, num_dims, num_var)
    logsigma_kdv : (num_dist, num_dims, num_var)
    returns      : (batch_size, num_dist, num_nodes) with num_nodes == num_var
    """
    B, D, V = x_bdv.shape
    K = mu_kdv.shape[0]
    assert mu_kdv.shape == (K, D, V) and logsigma_kdv.shape == (K, D, V)

    f32 = jnp.float32
    x = x_bdv.astype(f32)
    mu = mu_kdv.astype(f32)
    ls = logsigma_kdv.astype(f32)

    # ---- parameter-only math, hoisted out of the kernel grid loop ---------
    inv_var = jnp.exp(-2.0 * ls)                                   # (K, D, V)
    a = (-0.5) * inv_var                                           # (K, D, V)
    b = mu * inv_var                                               # (K, D, V)
    c = (jnp.sum(-0.5 * mu * mu * inv_var - ls, axis=1)
         - 0.5 * D * _LOG_2PI)                                     # (K, V)

    # ---- lane-dense layout: pad node axis to a multiple of 128 ------------
    Vp = _round_up(V, 128)
    if Vp != V:
        pad3 = [(0, 0), (0, 0), (0, Vp - V)]
        x = jnp.pad(x, pad3)
        a = jnp.pad(a, pad3)
        b = jnp.pad(b, pad3)
        c = jnp.pad(c, [(0, 0), (0, Vp - V)])

    TV = _pick_v_tile(Vp)
    # Batch tile sized so the output tile is ~1 MiB (amortizes per-step
    # overhead, keeps double-buffered VMEM well inside the 64 MiB v7x budget).
    TB = int(max(1, min(B, (1 << 20) // (K * TV * 4))))
    nv = Vp // TV
    nb = pl.cdiv(B, TB)

    out = pl.pallas_call(
        _gaussian_leaf_kernel,
        out_shape=jax.ShapeDtypeStruct((B, K, Vp), f32),
        grid_spec=pltpu.PrefetchScalarGridSpec(
            num_scalar_prefetch=0,
            # V tiles outer, batch tiles inner: parameter blocks (which only
            # depend on the V tile) are reused across all inner batch steps.
            grid=(nv, nb),
            in_specs=[
                pl.BlockSpec((TB, D, TV), lambda vi, bi: (bi, 0, vi)),   # x
                pl.BlockSpec((K, D, TV), lambda vi, bi: (0, 0, vi)),     # a
                pl.BlockSpec((K, D, TV), lambda vi, bi: (0, 0, vi)),     # b
                pl.BlockSpec((K, TV), lambda vi, bi: (0, vi)),           # c
            ],
            out_specs=pl.BlockSpec((TB, K, TV), lambda vi, bi: (bi, 0, vi)),
        ),
        compiler_params=pltpu.CompilerParams(
            dimension_semantics=("parallel", "parallel"),
            vmem_limit_bytes=32 * 1024 * 1024,   # safe on v5e/v6e/v7x
        ),
    )(x, a, b, c)

    if Vp != V:
        out = out[:, :, :V]
    return out


def layer_forward(x_bvd, mu_kdv, logsigma_kdv):
    """EiNet Layer.forward with the PyTorch input convention.

    x_bvd : (batch_size, num_var, num_dims)  (or (batch_size, num_var) if
            num_dims == 1, per the reference docstring)
    """
    if x_bvd.ndim == 2:                       # num_dims == 1 convenience path
        x_bvd = x_bvd[:, :, None]
    # TODO(synk): callers that can provide x pre-laid-out as (B, D, V) should
    # call layer_forward_ndv directly to avoid this extra HBM transpose pass.
    x_bdv = jnp.transpose(x_bvd, (0, 2, 1))
    return layer_forward_ndv(x_bdv, mu_kdv, logsigma_kdv)


def _reference(x_bvd, mu_kdv, logsigma_kdv):
    # pure-JAX reference of the same math (original, non-reformulated form)
    x = jnp.transpose(x_bvd, (0, 2, 1))[:, None, :, :]        # (B, 1, D, V)
    mu = mu_kdv[None]                                          # (1, K, D, V)
    ls = logsigma_kdv[None]
    z = (x - mu) * jnp.exp(-ls)
    logp = -0.5 * z * z - ls - 0.5 * _LOG_2PI
    return jnp.sum(logp, axis=2)                               # (B, K, V)


if __name__ == "__main__":
    # Small shapes consistent with the docstring contract:
    #   batch_size=2, num_var (= num_nodes)=16, num_dims=4, num_dist (K)=8
    B, V, D, K = 2, 16, 4, 8

    key = jax.random.PRNGKey(0)
    k_x, k_mu, k_ls = jax.random.split(key, 3)

    x = jax.random.normal(k_x, (B, V, D), dtype=jnp.float32)
    # Deterministic synthetic parameters (no checkpoint load).
    mu = 0.5 * jax.random.normal(k_mu, (K, D, V), dtype=jnp.float32)
    log_sigma = 0.1 * jax.random.normal(k_ls, (K, D, V), dtype=jnp.float32)

    out = layer_forward(x, mu, log_sigma)
    out = jax.block_until_ready(out)

    assert out.shape == (B, K, V), out.shape
    ref = _reference(x, mu, log_sigma)
    assert jnp.allclose(out, ref, atol=1e-4, rtol=1e-4), "mismatch vs reference"

    print("KERNEL_OK")
</pallas_src>

<mosaic_0001>
module attributes {stable_mosaic.version = 11 : i64} {
  func.func @_gaussian_leaf_kernel(%arg0: i32, %arg1: i32, %arg2: memref<2x4x128xf32, #tpu.memory_space<vmem>>, %arg3: memref<8x4x128xf32, #tpu.memory_space<vmem>>, %arg4: memref<8x4x128xf32, #tpu.memory_space<vmem>>, %arg5: memref<8x128xf32, #tpu.memory_space<vmem>>, %arg6: memref<2x8x128xf32, #tpu.memory_space<vmem>>) attributes {dimension_semantics = [#tpu.dimension_semantics<parallel>, #tpu.dimension_semantics<parallel>], iteration_bounds = array<i64: 1, 1>, scalar_prefetch = 0 : i64, scratch_operands = 0 : i64, tpu.core_type = #tpu.core_type<tc>, window_params = [{transform_indices = @transform_0, window_bounds = array<i64: 2, 4, 128>}, {transform_indices = @transform_1, window_bounds = array<i64: 8, 4, 128>}, {transform_indices = @transform_2, window_bounds = array<i64: 8, 4, 128>}, {transform_indices = @transform_3, window_bounds = array<i64: 8, 128>}, {transform_indices = @transform_4, window_bounds = array<i64: 2, 8, 128>}]} {
    %c0 = arith.constant 0 : index
    %c0_0 = arith.constant 0 : index
    %c0_1 = arith.constant 0 : index
    %0 = vector.load %arg2[%c0, %c0_0, %c0_1] : memref<2x4x128xf32, #tpu.memory_space<vmem>>, vector<2x1x128xf32>
    %1 = vector.shape_cast %0 : vector<2x1x128xf32> to vector<2x128xf32>
    %2 = vector.shape_cast %1 : vector<2x128xf32> to vector<2x1x128xf32>
    %c0_2 = arith.constant 0 : index
    %c0_3 = arith.constant 0 : index
    %c0_4 = arith.constant 0 : index
    %3 = vector.load %arg3[%c0_2, %c0_3, %c0_4] : memref<8x4x128xf32, #tpu.memory_space<vmem>>, vector<8x1x128xf32>
    %4 = vector.shape_cast %3 : vector<8x1x128xf32> to vector<8x128xf32>
    %5 = vector.shape_cast %4 : vector<8x128xf32> to vector<1x8x128xf32>
    %c0_5 = arith.constant 0 : index
    %c0_6 = arith.constant 0 : index
    %c0_7 = arith.constant 0 : index
    %6 = vector.load %arg4[%c0_5, %c0_6, %c0_7] : memref<8x4x128xf32, #tpu.memory_space<vmem>>, vector<8x1x128xf32>
    %7 = vector.shape_cast %6 : vector<8x1x128xf32> to vector<8x128xf32>
    %8 = vector.shape_cast %7 : vector<8x128xf32> to vector<1x8x128xf32>
    %9 = vector.broadcast %5 : vector<1x8x128xf32> to vector<2x8x128xf32>
    %10 = vector.broadcast %2 : vector<2x1x128xf32> to vector<2x8x128xf32>
    %11 = arith.mulf %9, %10 : vector<2x8x128xf32>
    %12 = vector.broadcast %8 : vector<1x8x128xf32> to vector<2x8x128xf32>
    %13 = arith.addf %11, %12 : vector<2x8x128xf32>
    %14 = vector.broadcast %2 : vector<2x1x128xf32> to vector<2x8x128xf32>
    %15 = arith.mulf %13, %14 : vector<2x8x128xf32>
    %c0_8 = arith.constant 0 : index
    %c1 = arith.constant 1 : index
    %c0_9 = arith.constant 0 : index
    %16 = vector.load %arg2[%c0_8, %c1, %c0_9] : memref<2x4x128xf32, #tpu.memory_space<vmem>>, vector<2x1x128xf32>
    %17 = vector.shape_cast %16 : vector<2x1x128xf32> to vector<2x128xf32>
    %18 = vector.shape_cast %17 : vector<2x128xf32> to vector<2x1x128xf32>
    %c0_10 = arith.constant 0 : index
    %c1_11 = arith.constant 1 : index
    %c0_12 = arith.constant 0 : index
    %19 = vector.load %arg3[%c0_10, %c1_11, %c0_12] : memref<8x4x128xf32, #tpu.memory_space<vmem>>, vector<8x1x128xf32>
    %20 = vector.shape_cast %19 : vector<8x1x128xf32> to vector<8x128xf32>
    %21 = vector.shape_cast %20 : vector<8x128xf32> to vector<1x8x128xf32>
    %c0_13 = arith.constant 0 : index
    %c1_14 = arith.constant 1 : index
    %c0_15 = arith.constant 0 : index
    %22 = vector.load %arg4[%c0_13, %c1_14, %c0_15] : memref<8x4x128xf32, #tpu.memory_space<vmem>>, vector<8x1x128xf32>
    %23 = vector.shape_cast %22 : vector<8x1x128xf32> to vector<8x128xf32>
    %24 = vector.shape_cast %23 : vector<8x128xf32> to vector<1x8x128xf32>
    %25 = vector.broadcast %21 : vector<1x8x128xf32> to vector<2x8x128xf32>
    %26 = vector.broadcast %18 : vector<2x1x128xf32> to vector<2x8x128xf32>
    %27 = arith.mulf %25, %26 : vector<2x8x128xf32>
    %28 = vector.broadcast %24 : vector<1x8x128xf32> to vector<2x8x128xf32>
    %29 = arith.addf %27, %28 : vector<2x8x128xf32>
    %30 = vector.broadcast %18 : vector<2x1x128xf32> to vector<2x8x128xf32>
    %31 = arith.mulf %29, %30 : vector<2x8x128xf32>
    %32 = arith.addf %15, %31 : vector<2x8x128xf32>
    %c0_16 = arith.constant 0 : index
    %c2 = arith.constant 2 : index
    %c0_17 = arith.constant 0 : index
    %33 = vector.load %arg2[%c0_16, %c2, %c0_17] : memref<2x4x128xf32, #tpu.memory_space<vmem>>, vector<2x1x128xf32>
    %34 = vector.shape_cast %33 : vector<2x1x128xf32> to vector<2x128xf32>
    %35 = vector.shape_cast %34 : vector<2x128xf32> to vector<2x1x128xf32>
    %c0_18 = arith.constant 0 : index
    %c2_19 = arith.constant 2 : index
    %c0_20 = arith.constant 0 : index
    %36 = vector.load %arg3[%c0_18, %c2_19, %c0_20] : memref<8x4x128xf32, #tpu.memory_space<vmem>>, vector<8x1x128xf32>
    %37 = vector.shape_cast %36 : vector<8x1x128xf32> to vector<8x128xf32>
    %38 = vector.shape_cast %37 : vector<8x128xf32> to vector<1x8x128xf32>
    %c0_21 = arith.constant 0 : index
    %c2_22 = arith.constant 2 : index
    %c0_23 = arith.constant 0 : index
    %39 = vector.load %arg4[%c0_21, %c2_22, %c0_23] : memref<8x4x128xf32, #tpu.memory_space<vmem>>, vector<8x1x128xf32>
    %40 = vector.shape_cast %39 : vector<8x1x128xf32> to vector<8x128xf32>
    %41 = vector.shape_cast %40 : vector<8x128xf32> to vector<1x8x128xf32>
    %42 = vector.broadcast %38 : vector<1x8x128xf32> to vector<2x8x128xf32>
    %43 = vector.broadcast %35 : vector<2x1x128xf32> to vector<2x8x128xf32>
    %44 = arith.mulf %42, %43 : vector<2x8x128xf32>
    %45 = vector.broadcast %41 : vector<1x8x128xf32> to vector<2x8x128xf32>
    %46 = arith.addf %44, %45 : vector<2x8x128xf32>
    %47 = vector.broadcast %35 : vector<2x1x128xf32> to vector<2x8x128xf32>
    %48 = arith.mulf %46, %47 : vector<2x8x128xf32>
    %49 = arith.addf %32, %48 : vector<2x8x128xf32>
    %c0_24 = arith.constant 0 : index
    %c3 = arith.constant 3 : index
    %c0_25 = arith.constant 0 : index
    %50 = vector.load %arg2[%c0_24, %c3, %c0_25] : memref<2x4x128xf32, #tpu.memory_space<vmem>>, vector<2x1x128xf32>
    %51 = vector.shape_cast %50 : vector<2x1x128xf32> to vector<2x128xf32>
    %52 = vector.shape_cast %51 : vector<2x128xf32> to vector<2x1x128xf32>
    %c0_26 = arith.constant 0 : index
    %c3_27 = arith.constant 3 : index
    %c0_28 = arith.constant 0 : index
    %53 = vector.load %arg3[%c0_26, %c3_27, %c0_28] : memref<8x4x128xf32, #tpu.memory_space<vmem>>, vector<8x1x128xf32>
    %54 = vector.shape_cast %53 : vector<8x1x128xf32> to vector<8x128xf32>
    %55 = vector.shape_cast %54 : vector<8x128xf32> to vector<1x8x128xf32>
    %c0_29 = arith.constant 0 : index
    %c3_30 = arith.constant 3 : index
    %c0_31 = arith.constant 0 : index
    %56 = vector.load %arg4[%c0_29, %c3_30, %c0_31] : memref<8x4x128xf32, #tpu.memory_space<vmem>>, vector<8x1x128xf32>
    %57 = vector.shape_cast %56 : vector<8x1x128xf32> to vector<8x128xf32>
    %58 = vector.shape_cast %57 : vector<8x128xf32> to vector<1x8x128xf32>
    %59 = vector.broadcast %55 : vector<1x8x128xf32> to vector<2x8x128xf32>
    %60 = vector.broadcast %52 : vector<2x1x128xf32> to vector<2x8x128xf32>
    %61 = arith.mulf %59, %60 : vector<2x8x128xf32>
    %62 = vector.broadcast %58 : vector<1x8x128xf32> to vector<2x8x128xf32>
    %63 = arith.addf %61, %62 : vector<2x8x128xf32>
    %64 = vector.broadcast %52 : vector<2x1x128xf32> to vector<2x8x128xf32>
    %65 = arith.mulf %63, %64 : vector<2x8x128xf32>
    %66 = arith.addf %49, %65 : vector<2x8x128xf32>
    %c0_32 = arith.constant 0 : index
    %c0_33 = arith.constant 0 : index
    %67 = vector.load %arg5[%c0_32, %c0_33] : memref<8x128xf32, #tpu.memory_space<vmem>>, vector<8x128xf32>
    %68 = vector.shape_cast %67 : vector<8x128xf32> to vector<1x8x128xf32>
    %69 = vector.broadcast %68 : vector<1x8x128xf32> to vector<2x8x128xf32>
    %70 = arith.addf %66, %69 : vector<2x8x128xf32>
    %c0_34 = arith.constant 0 : index
    %c0_35 = arith.constant 0 : index
    %c0_36 = arith.constant 0 : index
    %71 = vector.load %arg6[%c0_34, %c0_35, %c0_36] : memref<2x8x128xf32, #tpu.memory_space<vmem>>, vector<2x8x128xf32>
    tpu.vector_store %arg6[%c0_34, %c0_35, %c0_36], %70 {strides = array<i32>} : memref<2x8x128xf32, #tpu.memory_space<vmem>>, vector<2x8x128xf32>,
    return
  }
  func.func @transform_0(%arg0: i32, %arg1: i32) -> (i32, i32, i32) {
    %c0_i32 = arith.constant 0 : i32
    %c0_i32_0 = arith.constant 0 : i32
    return %arg1, %c0_i32, %arg0 : i32, i32, i32
  }
  func.func @transform_1(%arg0: i32, %arg1: i32) -> (i32, i32, i32) {
    %c0_i32 = arith.constant 0 : i32
    %c0_i32_0 = arith.constant 0 : i32
    %c0_i32_1 = arith.constant 0 : i32
    return %c0_i32, %c0_i32_0, %arg0 : i32, i32, i32
  }
  func.func @transform_2(%arg0: i32, %arg1: i32) -> (i32, i32, i32) {
    %c0_i32 = arith.constant 0 : i32
    %c0_i32_0 = arith.constant 0 : i32
    %c0_i32_1 = arith.constant 0 : i32
    return %c0_i32, %c0_i32_0, %arg0 : i32, i32, i32
  }
  func.func @transform_3(%arg0: i32, %arg1: i32) -> (i32, i32) {
    %c0_i32 = arith.constant 0 : i32
    %c0_i32_0 = arith.constant 0 : i32
    return %c0_i32, %arg0 : i32, i32
  }
  func.func @transform_4(%arg0: i32, %arg1: i32) -> (i32, i32, i32) {
    %c0_i32 = arith.constant 0 : i32
    %c0_i32_0 = arith.constant 0 : i32
    return %arg1, %c0_i32, %arg0 : i32, i32, i32
  }
}

</mosaic_0001>

<llo_original>
// kernel: tpu_custom_call.1
$region0: #{tpu_custom_call.1}
  #allocation0 [shape = 'u32[]', space=smem, size = 0x4, offset = 0x4, fixed_abs, tag = 'smem constant byte address 0x4 - core index']
  #allocation1 [shape = 'u32[144,128]{1,0:T(1,128)}', space=vmem, size = 0x12000, scoped, tag = 'internal scratch']
  %s0 = inlined_call_operand.hbm [shape: f32[2,4,128], index: 0, kind: input, shape index: {}]
  %s1 = inlined_call_operand.hbm [shape: f32[8,4,128], index: 1, kind: input, shape index: {}]
  %s2 = inlined_call_operand.hbm [shape: f32[8,4,128], index: 2, kind: input, shape index: {}]
  %s3 = inlined_call_operand.vmem [shape: f32[8,128], index: 3, kind: input, shape index: {}]
  %s4 = inlined_call_operand.hbm [shape: f32[2,8,128], index: 4, kind: output, shape index: {}]
  %s5 = sld [smem:[#allocation0]]
  $region38: #{tpu_custom_call.1} parent=0
    _
  %s7 = ssub.s32 1, %s5
  %s8 = scalar_select 0, %s7, %s5
  $region1: #{tpu_custom_call.1} parent=0
    #allocation2 [shape = 'u8[4096]{0}', space=vmem, size = 0x1000, scoped, tag = 'input window, operand 0, single buffered']
    #allocation3 [shape = 's32[1]{0}', space=sflag, size = 0x4, scoped, tag = 'scoped memory for tpu_custom_call.1']
    #allocation4 [shape = 's32[1]{0}', space=sflag, size = 0x4, scoped, tag = 'scoped memory for tpu_custom_call.1']
    #allocation5 [shape = 'u8[16384]{0}', space=vmem, size = 0x4000, scoped, tag = 'input window, operand 1, single buffered']
    #allocation6 [shape = 's32[1]{0}', space=sflag, size = 0x4, scoped, tag = 'scoped memory for tpu_custom_call.1']
    #allocation7 [shape = 'u8[16384]{0}', space=vmem, size = 0x4000, scoped, tag = 'input window, operand 2, single buffered']
    #allocation8 [shape = 'u8[8192]{0}', space=vmem, size = 0x2000, scoped, tag = 'output window, operand 0, single buffered']
    %9 = vsyncpa [#allocation3], 0
    %10 = vsyncpa [#allocation6], 0
    %11 = vsyncpa [#allocation4], 0
    // Predicated region
    $region2: #{tpu_custom_call.1} parent=1 // pred_check
      _
    $region3: #{tpu_custom_call.1} parent=1 // pred_check_branch
      %13 = sbr.rel (0) target = $region5
    $region4: #{tpu_custom_call.1} parent=1 // pred_region
      %s15 = ssub.s32 128, 128
      %16 = vsyncadd [#allocation3], %s15
      %s17 = sshll.u32 [#allocation2], 4
      %s18 = int_to_ptr.vmem [resolvable:$true] %s17
      %23 = dma.hbm_to_vmem [thread:$0]  %s0, 128, %s18, [#allocation3], 64, 64, 4
    $region5: #{tpu_custom_call.1} parent=1 // pred_fallthru
      _
    // Predicated region
    $region6: #{tpu_custom_call.1} parent=1 // pred_check
      _
    $region7: #{tpu_custom_call.1} parent=1 // pred_check_branch
      %25 = sbr.rel (0) target = $region9
    $region8: #{tpu_custom_call.1} parent=1 // pred_region
      %s27 = ssub.s32 512, 512
      %28 = vsyncadd [#allocation6], %s27
      %s29 = sshll.u32 [#allocation5], 4
      %s30 = int_to_ptr.vmem [resolvable:$true] %s29
      %35 = dma.hbm_to_vmem [thread:$0]  %s1, 512, %s30, [#allocation6], 64, 64, 4
    $region9: #{tpu_custom_call.1} parent=1 // pred_fallthru
      _
    // Predicated region
    $region10: #{tpu_custom_call.1} parent=1 // pred_check
      _
    $region11: #{tpu_custom_call.1} parent=1 // pred_check_branch
      %37 = sbr.rel (0) target = $region13
    $region12: #{tpu_custom_call.1} parent=1 // pred_region
      %s39 = ssub.s32 512, 512
      %40 = vsyncadd [#allocation6], %s39
      %s41 = sshll.u32 [#allocation7], 4
      %s42 = int_to_ptr.vmem [resolvable:$true] %s41
      %47 = dma.hbm_to_vmem [thread:$0]  %s2, 512, %s42, [#allocation6], 64, 64, 4
    $region13: #{tpu_custom_call.1} parent=1 // pred_fallthru
      _
    // Predicated region
    $region14: #{tpu_custom_call.1} parent=1 // pred_check
      _
    $region15: #{tpu_custom_call.1} parent=1 // pred_check_branch
      %49 = sbr.rel (0) target = $region17
    $region16: #{tpu_custom_call.1} parent=1 // pred_region
      _
    $region17: #{tpu_custom_call.1} parent=1 // pred_fallthru
      _
    // Predicated region
    $region18: #{tpu_custom_call.1} parent=1 // pred_check
      _
    $region19: #{tpu_custom_call.1} parent=1 // pred_check_branch
      %51 = sbr.rel (0) target = $region21
    $region20: #{tpu_custom_call.1} parent=1 // pred_region
      %52 = dma.done [#allocation3], 128
    $region21: #{tpu_custom_call.1} parent=1 // pred_fallthru
      _
    // Predicated region
    $region22: #{tpu_custom_call.1} parent=1 // pred_check
      _
    $region23: #{tpu_custom_call.1} parent=1 // pred_check_branch
      %54 = sbr.rel (0) target = $region25
    $region24: #{tpu_custom_call.1} parent=1 // pred_region
      %55 = dma.done [#allocation6], 512
    $region25: #{tpu_custom_call.1} parent=1 // pred_fallthru
      _
    // Predicated region
    $region26: #{tpu_custom_call.1} parent=1 // pred_check
      _
    $region27: #{tpu_custom_call.1} parent=1 // pred_check_branch
      %57 = sbr.rel (0) target = $region29
    $region28: #{tpu_custom_call.1} parent=1 // pred_region
      %58 = dma.done [#allocation6], 512
    $region29: #{tpu_custom_call.1} parent=1 // pred_fallthru
      _
    %v59 = vld [vmem:[#allocation2] sm:$0x1]
    %v60 = vld [vmem:[#allocation2 + $0x4] sm:$0x1]
    %v61 = vld [vmem:[#allocation5] sm:$0x1]
    %v62 = vld [vmem:[#allocation5 + $0x4] sm:$0x1]
    %v63 = vld [vmem:[#allocation5 + $0x8] sm:$0x1]
    %v64 = vld [vmem:[#allocation5 + $0xc] sm:$0x1]
    %v65 = vld [vmem:[#allocation5 + $0x10] sm:$0x1]
    %v66 = vld [vmem:[#allocation5 + $0x14] sm:$0x1]
    %v67 = vld [vmem:[#allocation5 + $0x18] sm:$0x1]
    %v68 = vld [vmem:[#allocation5 + $0x1c] sm:$0x1]
    %v69 = vld [vmem:[#allocation7] sm:$0x1]
    %v70 = vld [vmem:[#allocation7 + $0x4] sm:$0x1]
    %v71 = vld [vmem:[#allocation7 + $0x8] sm:$0x1]
    %v72 = vld [vmem:[#allocation7 + $0xc] sm:$0x1]
    %v73 = vld [vmem:[#allocation7 + $0x10] sm:$0x1]
    %v74 = vld [vmem:[#allocation7 + $0x14] sm:$0x1]
    %v75 = vld [vmem:[#allocation7 + $0x18] sm:$0x1]
    %v76 = vld [vmem:[#allocation7 + $0x1c] sm:$0x1]
    %v77 = vlaneseq
    %v78 = vshrl.u32 %v77, 7
    %v79 = vsub.s32 0, %v78
    %v80 = vrot.slane %v59, %v79
    %v81 = vlaneseq
    %v82 = vshrl.u32 %v81, 7
    %v83 = vsub.s32 0, %v82
    %v84 = vrot.slane %v60, %v83
    %v85 = vmul.f32 %v61, %v80
    %v86 = vmul.f32 %v62, %v80
    %v87 = vmul.f32 %v63, %v80
    %v88 = vmul.f32 %v64, %v80
    %v89 = vmul.f32 %v65, %v80
    %v90 = vmul.f32 %v66, %v80
    %v91 = vmul.f32 %v67, %v80
    %v92 = vmul.f32 %v68, %v80
    %v93 = vmul.f32 %v61, %v84
    %v94 = vmul.f32 %v62, %v84
    %v95 = vmul.f32 %v63, %v84
    %v96 = vmul.f32 %v64, %v84
    %v97 = vmul.f32 %v65, %v84
    %v98 = vmul.f32 %v66, %v84
    %v99 = vmul.f32 %v67, %v84
    %v100 = vmul.f32 %v68, %v84
    %v101 = vadd.f32 %v85, %v69
    %v102 = vadd.f32 %v86, %v70
    %v103 = vadd.f32 %v87, %v71
    %v104 = vadd.f32 %v88, %v72
    %v105 = vadd.f32 %v89, %v73
    %v106 = vadd.f32 %v90, %v74
    %v107 = vadd.f32 %v91, %v75
    %v108 = vadd.f32 %v92, %v76
    %v109 = vadd.f32 %v93, %v69
    %v110 = vadd.f32 %v94, %v70
    %v111 = vadd.f32 %v95, %v71
    %v112 = vadd.f32 %v96, %v72
    %v113 = vadd.f32 %v97, %v73
    %v114 = vadd.f32 %v98, %v74
    %v115 = vadd.f32 %v99, %v75
    %v116 = vadd.f32 %v100, %v76
    %v117 = vmul.f32 %v101, %v80
    %v118 = vmul.f32 %v102, %v80
    %v119 = vmul.f32 %v103, %v80
    %v120 = vmul.f32 %v104, %v80
    %v121 = vmul.f32 %v105, %v80
    %v122 = vmul.f32 %v106, %v80
    %v123 = vmul.f32 %v107, %v80
    %v124 = vmul.f32 %v108, %v80
    %v125 = vmul.f32 %v109, %v84
    %v126 = vmul.f32 %v110, %v84
    %v127 = vmul.f32 %v111, %v84
    %v128 = vmul.f32 %v112, %v84
    %v129 = vmul.f32 %v113, %v84
    %v130 = vmul.f32 %v114, %v84
    %v131 = vmul.f32 %v115, %v84
    %v132 = vmul.f32 %v116, %v84
    %v133 = vld [vmem:[#allocation2 + $0x1] sm:$0x1]
    %v134 = vld [vmem:[#allocation2 + $0x5] sm:$0x1]
    %v135 = vld [vmem:[#allocation5 + $0x1] sm:$0x1]
    %v136 = vld [vmem:[#allocation5 + $0x5] sm:$0x1]
    %v137 = vld [vmem:[#allocation5 + $0x9] sm:$0x1]
    %v138 = vld [vmem:[#allocation5 + $0xd] sm:$0x1]
    %v139 = vld [vmem:[#allocation5 + $0x11] sm:$0x1]
    %v140 = vld [vmem:[#allocation5 + $0x15] sm:$0x1]
    %v141 = vld [vmem:[#allocation5 + $0x19] sm:$0x1]
    %v142 = vld [vmem:[#allocation5 + $0x1d] sm:$0x1]
    %v143 = vld [vmem:[#allocation7 + $0x1] sm:$0x1]
    %v144 = vld [vmem:[#allocation7 + $0x5] sm:$0x1]
    %v145 = vld [vmem:[#allocation7 + $0x9] sm:$0x1]
    %v146 = vld [vmem:[#allocation7 + $0xd] sm:$0x1]
    %v147 = vld [vmem:[#allocation7 + $0x11] sm:$0x1]
    %v148 = vld [vmem:[#allocation7 + $0x15] sm:$0x1]
    %v149 = vld [vmem:[#allocation7 + $0x19] sm:$0x1]
    %v150 = vld [vmem:[#allocation7 + $0x1d] sm:$0x1]
    %v151 = vlaneseq
    %v152 = vshrl.u32 %v151, 7
    %v153 = vsub.s32 0, %v152
    %v154 = vrot.slane %v133, %v153
    %v155 = vlaneseq
    %v156 = vshrl.u32 %v155, 7
    %v157 = vsub.s32 0, %v156
    %v158 = vrot.slane %v134, %v157
    %v159 = vmul.f32 %v135, %v154
    %v160 = vmul.f32 %v136, %v154
    %v161 = vmul.f32 %v137, %v154
    %v162 = vmul.f32 %v138, %v154
    %v163 = vmul.f32 %v139, %v154
    %v164 = vmul.f32 %v140, %v154
    %v165 = vmul.f32 %v141, %v154
    %v166 = vmul.f32 %v142, %v154
    %v167 = vmul.f32 %v135, %v158
    %v168 = vmul.f32 %v136, %v158
    %v169 = vmul.f32 %v137, %v158
    %v170 = vmul.f32 %v138, %v158
    %v171 = vmul.f32 %v139, %v158
    %v172 = vmul.f32 %v140, %v158
    %v173 = vmul.f32 %v141, %v158
    %v174 = vmul.f32 %v142, %v158
    %v175 = vadd.f32 %v159, %v143
    %v176 = vadd.f32 %v160, %v144
    %v177 = vadd.f32 %v161, %v145
    %v178 = vadd.f32 %v162, %v146
    %v179 = vadd.f32 %v163, %v147
    %v180 = vadd.f32 %v164, %v148
    %v181 = vadd.f32 %v165, %v149
    %v182 = vadd.f32 %v166, %v150
    %v183 = vadd.f32 %v167, %v143
    %v184 = vadd.f32 %v168, %v144
    %v185 = vadd.f32 %v169, %v145
    %v186 = vadd.f32 %v170, %v146
    %v187 = vadd.f32 %v171, %v147
    %v188 = vadd.f32 %v172, %v148
    %v189 = vadd.f32 %v173, %v149
    %v190 = vadd.f32 %v174, %v150
    %v191 = vmul.f32 %v175, %v154
    %v192 = vmul.f32 %v176, %v154
    %v193 = vmul.f32 %v177, %v154
    %v194 = vmul.f32 %v178, %v154
    %v195 = vmul.f32 %v179, %v154
    %v196 = vmul.f32 %v180, %v154
    %v197 = vmul.f32 %v181, %v154
    %v198 = vmul.f32 %v182, %v154
    %v199 = vmul.f32 %v183, %v158
    %v200 = vmul.f32 %v184, %v158
    %v201 = vmul.f32 %v185, %v158
    %v202 = vmul.f32 %v186, %v158
    %v203 = vmul.f32 %v187, %v158
    %v204 = vmul.f32 %v188, %v158
    %v205 = vmul.f32 %v189, %v158
    %v206 = vmul.f32 %v190, %v158
    %v207 = vadd.f32 %v117, %v191
    %v208 = vadd.f32 %v118, %v192
    %v209 = vadd.f32 %v119, %v193
    %v210 = vadd.f32 %v120, %v194
    %v211 = vadd.f32 %v121, %v195
    %v212 = vadd.f32 %v122, %v196
    %v213 = vadd.f32 %v123, %v197
    %v214 = vadd.f32 %v124, %v198
    %v215 = vadd.f32 %v125, %v199
    %v216 = vadd.f32 %v126, %v200
    %v217 = vadd.f32 %v127, %v201
    %v218 = vadd.f32 %v128, %v202
    %v219 = vadd.f32 %v129, %v203
    %v220 = vadd.f32 %v130, %v204
    %v221 = vadd.f32 %v131, %v205
    %v222 = vadd.f32 %v132, %v206
    %v223 = vld [vmem:[#allocation2 + $0x2] sm:$0x1]
    %v224 = vld [vmem:[#allocation2 + $0x6] sm:$0x1]
    %v225 = vld [vmem:[#allocation5 + $0x2] sm:$0x1]
    %v226 = vld [vmem:[#allocation5 + $0x6] sm:$0x1]
    %v227 = vld [vmem:[#allocation5 + $0xa] sm:$0x1]
    %v228 = vld [vmem:[#allocation5 + $0xe] sm:$0x1]
    %v229 = vld [vmem:[#allocation5 + $0x12] sm:$0x1]
    %v230 = vld [vmem:[#allocation5 + $0x16] sm:$0x1]
    %v231 = vld [vmem:[#allocation5 + $0x1a] sm:$0x1]
    %v232 = vld [vmem:[#allocation5 + $0x1e] sm:$0x1]
    %v233 = vld [vmem:[#allocation7 + $0x2] sm:$0x1]
    %v234 = vld [vmem:[#allocation7 + $0x6] sm:$0x1]
    %v235 = vld [vmem:[#allocation7 + $0xa] sm:$0x1]
    %v236 = vld [vmem:[#allocation7 + $0xe] sm:$0x1]
    %v237 = vld [vmem:[#allocation7 + $0x12] sm:$0x1]
    %v238 = vld [vmem:[#allocation7 + $0x16] sm:$0x1]
    %v239 = vld [vmem:[#allocation7 + $0x1a] sm:$0x1]
    %v240 = vld [vmem:[#allocation7 + $0x1e] sm:$0x1]
    %v241 = vlaneseq
    %v242 = vshrl.u32 %v241, 7
    %v243 = vsub.s32 0, %v242
    %v244 = vrot.slane %v223, %v243
    %v245 = vlaneseq
    %v246 = vshrl.u32 %v245, 7
    %v247 = vsub.s32 0, %v246
    %v248 = vrot.slane %v224, %v247
    %v249 = vmul.f32 %v225, %v244
    %v250 = vmul.f32 %v226, %v244
    %v251 = vmul.f32 %v227, %v244
    %v252 = vmul.f32 %v228, %v244
    %v253 = vmul.f32 %v229, %v244
    %v254 = vmul.f32 %v230, %v244
    %v255 = vmul.f32 %v231, %v244
    %v256 = vmul.f32 %v232, %v244
    %v257 = vmul.f32 %v225, %v248
    %v258 = vmul.f32 %v226, %v248
    %v259 = vmul.f32 %v227, %v248
    %v260 = vmul.f32 %v228, %v248
    %v261 = vmul.f32 %v229, %v248
    %v262 = vmul.f32 %v230, %v248
    %v263 = vmul.f32 %v231, %v248
    %v264 = vmul.f32 %v232, %v248
    %v265 = vadd.f32 %v249, %v233
    %v266 = vadd.f32 %v250, %v234
    %v267 = vadd.f32 %v251, %v235
    %v268 = vadd.f32 %v252, %v236
    %v269 = vadd.f32 %v253, %v237
    %v270 = vadd.f32 %v254, %v238
    %v271 = vadd.f32 %v255, %v239
    %v272 = vadd.f32 %v256, %v240
    %v273 = vadd.f32 %v257, %v233
    %v274 = vadd.f32 %v258, %v234
    %v275 = vadd.f32 %v259, %v235
    %v276 = vadd.f32 %v260, %v236
    %v277 = vadd.f32 %v261, %v237
    %v278 = vadd.f32 %v262, %v238
    %v279 = vadd.f32 %v263, %v239
    %v280 = vadd.f32 %v264, %v240
    %v281 = vmul.f32 %v265, %v244
    %v282 = vmul.f32 %v266, %v244
    %v283 = vmul.f32 %v267, %v244
    %v284 = vmul.f32 %v268, %v244
    %v285 = vmul.f32 %v269, %v244
    %v286 = vmul.f32 %v270, %v244
    %v287 = vmul.f32 %v271, %v244
    %v288 = vmul.f32 %v272, %v244
    %v289 = vmul.f32 %v273, %v248
    %v290 = vmul.f32 %v274, %v248
    %v291 = vmul.f32 %v275, %v248
    %v292 = vmul.f32 %v276, %v248
    %v293 = vmul.f32 %v277, %v248
    %v294 = vmul.f32 %v278, %v248
    %v295 = vmul.f32 %v279, %v248
    %v296 = vmul.f32 %v280, %v248
    %v297 = vadd.f32 %v207, %v281
    %v298 = vadd.f32 %v208, %v282
    %v299 = vadd.f32 %v209, %v283
    %v300 = vadd.f32 %v210, %v284
    %v301 = vadd.f32 %v211, %v285
    %v302 = vadd.f32 %v212, %v286
    %v303 = vadd.f32 %v213, %v287
    %v304 = vadd.f32 %v214, %v288
    %v305 = vadd.f32 %v215, %v289
    %v306 = vadd.f32 %v216, %v290
    %v307 = vadd.f32 %v217, %v291
    %v308 = vadd.f32 %v218, %v292
    %v309 = vadd.f32 %v219, %v293
    %v310 = vadd.f32 %v220, %v294
    %v311 = vadd.f32 %v221, %v295
    %v312 = vadd.f32 %v222, %v296
    %v313 = vld [vmem:[#allocation2 + $0x3] sm:$0x1]
    %v314 = vld [vmem:[#allocation2 + $0x7] sm:$0x1]
    %v315 = vld [vmem:[#allocation5 + $0x3] sm:$0x1]
    %v316 = vld [vmem:[#allocation5 + $0x7] sm:$0x1]
    %v317 = vld [vmem:[#allocation5 + $0xb] sm:$0x1]
    %v318 = vld [vmem:[#allocation5 + $0xf] sm:$0x1]
    %v319 = vld [vmem:[#allocation5 + $0x13] sm:$0x1]
    %v320 = vld [vmem:[#allocation5 + $0x17] sm:$0x1]
    %v321 = vld [vmem:[#allocation5 + $0x1b] sm:$0x1]
    %v322 = vld [vmem:[#allocation5 + $0x1f] sm:$0x1]
    %v323 = vld [vmem:[#allocation7 + $0x3] sm:$0x1]
    %v324 = vld [vmem:[#allocation7 + $0x7] sm:$0x1]
    %v325 = vld [vmem:[#allocation7 + $0xb] sm:$0x1]
    %v326 = vld [vmem:[#allocation7 + $0xf] sm:$0x1]
    %v327 = vld [vmem:[#allocation7 + $0x13] sm:$0x1]
    %v328 = vld [vmem:[#allocation7 + $0x17] sm:$0x1]
    %v329 = vld [vmem:[#allocation7 + $0x1b] sm:$0x1]
    %v330 = vld [vmem:[#allocation7 + $0x1f] sm:$0x1]
    %v331 = vlaneseq
    %v332 = vshrl.u32 %v331, 7
    %v333 = vsub.s32 0, %v332
    %v334 = vrot.slane %v313, %v333
    %v335 = vlaneseq
    %v336 = vshrl.u32 %v335, 7
    %v337 = vsub.s32 0, %v336
    %v338 = vrot.slane %v314, %v337
    %v339 = vmul.f32 %v315, %v334
    %v340 = vmul.f32 %v316, %v334
    %v341 = vmul.f32 %v317, %v334
    %v342 = vmul.f32 %v318, %v334
    %v343 = vmul.f32 %v319, %v334
    %v344 = vmul.f32 %v320, %v334
    %v345 = vmul.f32 %v321, %v334
    %v346 = vmul.f32 %v322, %v334
    %v347 = vmul.f32 %v315, %v338
    %v348 = vmul.f32 %v316, %v338
    %v349 = vmul.f32 %v317, %v338
    %v350 = vmul.f32 %v318, %v338
    %v351 = vmul.f32 %v319, %v338
    %v352 = vmul.f32 %v320, %v338
    %v353 = vmul.f32 %v321, %v338
    %v354 = vmul.f32 %v322, %v338
    %v355 = vadd.f32 %v339, %v323
    %v356 = vadd.f32 %v340, %v324
    %v357 = vadd.f32 %v341, %v325
    %v358 = vadd.f32 %v342, %v326
    %v359 = vadd.f32 %v343, %v327
    %v360 = vadd.f32 %v344, %v328
    %v361 = vadd.f32 %v345, %v329
    %v362 = vadd.f32 %v346, %v330
    %v363 = vadd.f32 %v347, %v323
    %v364 = vadd.f32 %v348, %v324
    %v365 = vadd.f32 %v349, %v325
    %v366 = vadd.f32 %v350, %v326
    %v367 = vadd.f32 %v351, %v327
    %v368 = vadd.f32 %v352, %v328
    %v369 = vadd.f32 %v353, %v329
    %v370 = vadd.f32 %v354, %v330
    %v371 = vmul.f32 %v355, %v334
    %v372 = vmul.f32 %v356, %v334
    %v373 = vmul.f32 %v357, %v334
    %v374 = vmul.f32 %v358, %v334
    %v375 = vmul.f32 %v359, %v334
    %v376 = vmul.f32 %v360, %v334
    %v377 = vmul.f32 %v361, %v334
    %v378 = vmul.f32 %v362, %v334
    %v379 = vmul.f32 %v363, %v338
    %v380 = vmul.f32 %v364, %v338
    %v381 = vmul.f32 %v365, %v338
    %v382 = vmul.f32 %v366, %v338
    %v383 = vmul.f32 %v367, %v338
    %v384 = vmul.f32 %v368, %v338
    %v385 = vmul.f32 %v369, %v338
    %v386 = vmul.f32 %v370, %v338
    %v387 = vadd.f32 %v297, %v371
    %v388 = vadd.f32 %v298, %v372
    %v389 = vadd.f32 %v299, %v373
    %v390 = vadd.f32 %v300, %v374
    %v391 = vadd.f32 %v301, %v375
    %v392 = vadd.f32 %v302, %v376
    %v393 = vadd.f32 %v303, %v377
    %v394 = vadd.f32 %v304, %v378
    %v395 = vadd.f32 %v305, %v379
    %v396 = vadd.f32 %v306, %v380
    %v397 = vadd.f32 %v307, %v381
    %v398 = vadd.f32 %v308, %v382
    %v399 = vadd.f32 %v309, %v383
    %v400 = vadd.f32 %v310, %v384
    %v401 = vadd.f32 %v311, %v385
    %v402 = vadd.f32 %v312, %v386
    %v403 = vld [vmem:[%s3] sm:$0xff]
    %v405 = vrot.slane %v403, 1
    %v406 = vrot.slane %v403, 2
    %v407 = vrot.slane %v403, 3
    %v408 = vrot.slane %v403, 4
    %v409 = vrot.slane %v403, 5
    %v410 = vrot.slane %v403, 6
    %v411 = vrot.slane %v403, 7
    %v420 = vadd.f32 %v387, %v403
    %v421 = vadd.f32 %v388, %v405
    %v422 = vadd.f32 %v389, %v406
    %v423 = vadd.f32 %v390, %v407
    %v424 = vadd.f32 %v391, %v408
    %v425 = vadd.f32 %v392, %v409
    %v426 = vadd.f32 %v393, %v410
    %v427 = vadd.f32 %v394, %v411
    %v428 = vadd.f32 %v395, %v403
    %v429 = vadd.f32 %v396, %v405
    %v430 = vadd.f32 %v397, %v406
    %v431 = vadd.f32 %v398, %v407
    %v432 = vadd.f32 %v399, %v408
    %v433 = vadd.f32 %v400, %v409
    %v434 = vadd.f32 %v401, %v410
    %v435 = vadd.f32 %v402, %v411
    %v452 = vrot.slane %v421, 7
    %vm453 = vcmask 1041409
    %v454 = vsel %vm453, %v452, %v420
    %v455 = vrot.slane %v422, 6
    %vm456 = vcmask 1042434
    %v457 = vsel %vm456, %v455, %v454
    %v458 = vrot.slane %v423, 5
    %vm459 = vcmask 1043459
    %v460 = vsel %vm459, %v458, %v457
    %v461 = vrot.slane %v424, 4
    %vm462 = vcmask 1044484
    %v463 = vsel %vm462, %v461, %v460
    %v464 = vrot.slane %v425, 3
    %vm465 = vcmask 1045509
    %v466 = vsel %vm465, %v464, %v463
    %v467 = vrot.slane %v426, 2
    %vm468 = vcmask 1046534
    %v469 = vsel %vm468, %v467, %v466
    %v470 = vrot.slane %v427, 1
    %vm471 = vcmask 1047559
    %v472 = vsel %vm471, %v470, %v469
    %v473 = vrot.slane %v429, 7
    %v474 = vsel %vm453, %v473, %v428
    %v475 = vrot.slane %v430, 6
    %v476 = vsel %vm456, %v475, %v474
    %v477 = vrot.slane %v431, 5
    %v478 = vsel %vm459, %v477, %v476
    %v479 = vrot.slane %v432, 4
    %v480 = vsel %vm462, %v479, %v478
    %v481 = vrot.slane %v433, 3
    %v482 = vsel %vm465, %v481, %v480
    %v483 = vrot.slane %v434, 2
    %v484 = vsel %vm468, %v483, %v482
    %v485 = vrot.slane %v435, 1
    %v486 = vsel %vm471, %v485, %v484
    %489 = vst [vmem:[#allocation8] sm:$0xff] %v472
    %490 = vst [vmem:[#allocation8 + $0x8] sm:$0xff] %v486
    // Predicated region
    $region30: #{tpu_custom_call.1} parent=1 // pred_check
      _
    $region31: #{tpu_custom_call.1} parent=1 // pred_check_branch
      %492 = sbr.rel (0) target = $region33
    $region32: #{tpu_custom_call.1} parent=1 // pred_region
      %s494 = ssub.s32 256, 256
      %495 = vsyncadd [#allocation4], %s494
      %s496 = sshll.u32 [#allocation8], 4
      %s497 = int_to_ptr.vmem [resolvable:$true] %s496
      %502 = dma.vmem_to_hbm [thread:$0]  %s497, 256, %s4, [#allocation4], 128, 128, 8
    $region33: #{tpu_custom_call.1} parent=1 // pred_fallthru
      _
    // Predicated region
    $region34: #{tpu_custom_call.1} parent=1 // pred_check
      _
    $region35: #{tpu_custom_call.1} parent=1 // pred_check_branch
      %504 = sbr.rel (0) target = $region37
    $region36: #{tpu_custom_call.1} parent=1 // pred_region
      %505 = dma.done [#allocation4], 256
    $region37: #{tpu_custom_call.1} parent=1 // pred_fallthru
      _
    %506 = vsyncpa [#allocation3], 1
    %507 = vsyncpa [#allocation6], 1
    %508 = vsyncpa [#allocation4], 1

</llo_original>
